<compile_context>
chip_gen: v7x
topology: tpu7x:2x2x1
jax: 0.10.0
libtpu: 0.0.40
codegen_flags: <defaults>
</compile_context>

<pallas_src>
import jax
import jax.numpy as jnp
from jax.experimental import pallas as pl
from jax.experimental.pallas import tpu as pltpu


def _qnetwork_kernel(x_ref, w1_ref, b1_ref, w2_ref, b2_ref, out_ref):
    x = x_ref[...]                                              # (B, S) f32

    # Fused first layer: [h_v | h_a] in one lane-dense (B, 2H)=(B,128) tile.
    h = jnp.dot(x, w1_ref[...], preferred_element_type=jnp.float32)
    h = jnp.maximum(h + b1_ref[...], 0.0)                       # (B, 2H)

    # Fused second layer (block-diagonal weight): [v | a] in one (B, 1+A) tile.
    va = jnp.dot(h, w2_ref[...], preferred_element_type=jnp.float32)
    va = va + b2_ref[...]                                       # (B, 1+A)

    v = va[:, :1]                                               # (B, 1)
    a = va[:, 1:]                                               # (B, A)

    # Dueling combine with the module's GLOBAL mean over all B*A elements.
    a_mean = jnp.mean(a)
    out_ref[...] = v + (a - a_mean)                             # single (B, A) store


def fuse_params(p):
    """Pre-fuse the four Linear layers into 2 weights + 2 biases (done once)."""
    S, H = p["w1v"].shape
    A = p["w2a"].shape[1]
    w1 = jnp.concatenate([p["w1v"], p["w1a"]], axis=1)          # (S, 2H)
    b1 = jnp.concatenate([p["b1v"], p["b1a"]], axis=1)          # (1, 2H)
    w2 = jnp.zeros((2 * H, 1 + A), jnp.float32)                 # block-diagonal
    w2 = w2.at[:H, :1].set(p["w2v"])
    w2 = w2.at[H:, 1:].set(p["w2a"])
    b2 = jnp.concatenate([p["b2v"], p["b2a"]], axis=1)          # (1, 1+A)
    return w1, b1, w2, b2


def qnetwork_forward(x, fused_params):
    """x: (B, state_size) f32; fused_params: (w1, b1, w2, b2) from fuse_params."""
    w1, b1, w2, b2 = fused_params
    B = x.shape[0]
    A = w2.shape[1] - 1

    vmem_spec = pl.BlockSpec(memory_space=pltpu.MemorySpace.VMEM)
    return pl.pallas_call(
        _qnetwork_kernel,
        out_shape=jax.ShapeDtypeStruct((B, A), jnp.float32),
        in_specs=[vmem_spec] * 5,
        out_specs=vmem_spec,
    )(x, w1, b1, w2, b2)


def init_params(key, state_size, action_size, fc1_units=64):
    """Deterministic synthetic init (uniform, PyTorch-Linear-like bounds)."""
    ks = jax.random.split(key, 8)

    def lin(kw, kb, fan_in, fan_out):
        bound = 1.0 / jnp.sqrt(jnp.float32(fan_in))
        w = jax.random.uniform(kw, (fan_in, fan_out), jnp.float32, -bound, bound)
        b = jax.random.uniform(kb, (1, fan_out), jnp.float32, -bound, bound)
        return w, b

    w1v, b1v = lin(ks[0], ks[1], state_size, fc1_units)
    w2v, b2v = lin(ks[2], ks[3], fc1_units, 1)
    w1a, b1a = lin(ks[4], ks[5], state_size, fc1_units)
    w2a, b2a = lin(ks[6], ks[7], fc1_units, action_size)
    return dict(w1v=w1v, b1v=b1v, w2v=w2v, b2v=b2v,
                w1a=w1a, b1a=b1a, w2a=w2a, b2a=b2a)


def qnetwork_reference(x, p):
    """Pure-JAX reference mirroring the PyTorch module."""
    h_v = jnp.maximum(x @ p["w1v"] + p["b1v"], 0.0)
    v = h_v @ p["w2v"] + p["b2v"]
    h_a = jnp.maximum(x @ p["w1a"] + p["b1a"], 0.0)
    a = h_a @ p["w2a"] + p["b2a"]
    return v + (a - jnp.mean(a))


if __name__ == "__main__":
    B, STATE_SIZE, ACTION_SIZE, FC1 = 8, 16, 4, 64

    key = jax.random.PRNGKey(0)
    k_params, k_x = jax.random.split(key)
    params = init_params(k_params, STATE_SIZE, ACTION_SIZE, FC1)
    x = jax.random.normal(k_x, (B, STATE_SIZE), jnp.float32)

    fused = fuse_params(params)          # one-time host-side weight fusion
    out = qnetwork_forward(x, fused)
    out = jax.block_until_ready(out)

    ref = qnetwork_reference(x, params)
    assert out.shape == (B, ACTION_SIZE), out.shape
    assert jnp.allclose(out, ref, atol=1e-4, rtol=1e-4), "mismatch vs reference"

    print("KERNEL_OK")
</pallas_src>

<mosaic_0001>
module attributes {stable_mosaic.version = 11 : i64} {
  func.func @_qnetwork_kernel(%arg0: memref<8x16xf32, #tpu.memory_space<vmem>>, %arg1: memref<16x128xf32, #tpu.memory_space<vmem>>, %arg2: memref<1x128xf32, #tpu.memory_space<vmem>>, %arg3: memref<128x5xf32, #tpu.memory_space<vmem>>, %arg4: memref<1x5xf32, #tpu.memory_space<vmem>>, %arg5: memref<8x4xf32, #tpu.memory_space<vmem>>) attributes {dimension_semantics = [], scalar_prefetch = 0 : i64, scratch_operands = 0 : i64, tpu.core_type = #tpu.core_type<tc>} {
    %c0 = arith.constant 0 : index
    %c0_0 = arith.constant 0 : index
    %0 = vector.load %arg0[%c0, %c0_0] : memref<8x16xf32, #tpu.memory_space<vmem>>, vector<8x16xf32>
    %c0_1 = arith.constant 0 : index
    %c0_2 = arith.constant 0 : index
    %1 = vector.load %arg1[%c0_1, %c0_2] : memref<16x128xf32, #tpu.memory_space<vmem>>, vector<16x128xf32>
    %cst = arith.constant dense<0.000000e+00> : vector<8x128xf32>
    %2 = tpu.matmul %0, %1, %cst {dimension_numbers = #tpu.dot_dimension_numbers<[1], [0], [0], [1], [0, 0, 1, 1], [], []>} : vector<8x16xf32>, vector<16x128xf32>, vector<8x128xf32> -> vector<8x128xf32>
    %c0_3 = arith.constant 0 : index
    %c0_4 = arith.constant 0 : index
    %3 = vector.load %arg2[%c0_3, %c0_4] : memref<1x128xf32, #tpu.memory_space<vmem>>, vector<1x128xf32>
    %4 = vector.broadcast %3 : vector<1x128xf32> to vector<8x128xf32>
    %5 = arith.addf %2, %4 : vector<8x128xf32>
    %cst_5 = arith.constant 0.000000e+00 : f32
    %6 = vector.broadcast %cst_5 : f32 to vector<8x128xf32>
    %7 = arith.maximumf %5, %6 : vector<8x128xf32>
    %c0_6 = arith.constant 0 : index
    %c0_7 = arith.constant 0 : index
    %8 = vector.load %arg3[%c0_6, %c0_7] : memref<128x5xf32, #tpu.memory_space<vmem>>, vector<128x5xf32>
    %cst_8 = arith.constant dense<0.000000e+00> : vector<8x5xf32>
    %9 = tpu.matmul %7, %8, %cst_8 {dimension_numbers = #tpu.dot_dimension_numbers<[1], [0], [0], [1], [0, 0, 1, 1], [], []>} : vector<8x128xf32>, vector<128x5xf32>, vector<8x5xf32> -> vector<8x5xf32>
    %c0_9 = arith.constant 0 : index
    %c0_10 = arith.constant 0 : index
    %10 = vector.load %arg4[%c0_9, %c0_10] : memref<1x5xf32, #tpu.memory_space<vmem>>, vector<1x5xf32>
    %11 = vector.broadcast %10 : vector<1x5xf32> to vector<8x5xf32>
    %12 = arith.addf %9, %11 : vector<8x5xf32>
    %13 = vector.extract_strided_slice %12 {offsets = [0, 0], sizes = [8, 1], strides = [1, 1]} : vector<8x5xf32> to vector<8x1xf32>
    %14 = vector.extract_strided_slice %12 {offsets = [0, 1], sizes = [8, 4], strides = [1, 1]} : vector<8x5xf32> to vector<8x4xf32>
    %15 = vector.shape_cast %14 : vector<8x4xf32> to vector<1x8x4xf32>
    %cst_11 = arith.constant dense<0.000000e+00> : vector<1xf32>
    %16 = vector.multi_reduction <add>, %15, %cst_11 [1, 2] : vector<1x8x4xf32> to vector<1xf32>
    %17 = vector.shape_cast %16 : vector<1xf32> to vector<1x1x1xf32>
    %18 = vector.extract %17[0, 0, 0] : f32 from vector<1x1x1xf32>
    %cst_12 = arith.constant 3.200000e+01 : f32
    %19 = arith.divf %18, %cst_12 : f32
    %20 = vector.broadcast %19 : f32 to vector<8x4xf32>
    %21 = arith.subf %14, %20 : vector<8x4xf32>
    %22 = vector.broadcast %13 : vector<8x1xf32> to vector<8x4xf32>
    %23 = arith.addf %22, %21 : vector<8x4xf32>
    %c0_13 = arith.constant 0 : index
    %c0_14 = arith.constant 0 : index
    %24 = vector.load %arg5[%c0_13, %c0_14] : memref<8x4xf32, #tpu.memory_space<vmem>>, vector<8x4xf32>
    tpu.vector_store %arg5[%c0_13, %c0_14], %23 {strides = array<i32>} : memref<8x4xf32, #tpu.memory_space<vmem>>, vector<8x4xf32>,
    return
  }
}

</mosaic_0001>

<llo_original>
// kernel: tpu_custom_call.1
$region0: #{tpu_custom_call.1}
  #allocation0 [shape = 'u32[]', space=smem, size = 0x4, offset = 0x4, fixed_abs, tag = 'smem constant byte address 0x4 - core index']
  #allocation1 [shape = 'u32[144,128]{1,0:T(1,128)}', space=vmem, size = 0x12000, scoped, tag = 'internal scratch']
  %s0 = inlined_call_operand.vmem [shape: f32[8,16], index: 0, kind: input, shape index: {}]
  %s1 = inlined_call_operand.vmem [shape: f32[16,128], index: 1, kind: input, shape index: {}]
  %s2 = inlined_call_operand.vmem [shape: f32[1,128], index: 2, kind: input, shape index: {}]
  %s3 = inlined_call_operand.vmem [shape: f32[128,5], index: 3, kind: input, shape index: {}]
  %s4 = inlined_call_operand.vmem [shape: f32[1,5], index: 4, kind: input, shape index: {}]
  %s5 = inlined_call_operand.vmem [shape: f32[8,4], index: 5, kind: output, shape index: {}]
  %s6 = sld [smem:[#allocation0]]
  $region30: #{tpu_custom_call.1} parent=0
    _
  %s8 = ssub.s32 1, %s6
  %s9 = scalar_select 0, %s8, %s6
  // Predicated region
  $region2: #{tpu_custom_call.1} parent=0 // pred_check
    _
  $region3: #{tpu_custom_call.1} parent=0 // pred_check_branch
    %11 = sbr.rel (0) target = $region5
  $region4: #{tpu_custom_call.1} parent=0 // pred_region
    _
  $region5: #{tpu_custom_call.1} parent=0 // pred_fallthru
    _
  // Predicated region
  $region6: #{tpu_custom_call.1} parent=0 // pred_check
    _
  $region7: #{tpu_custom_call.1} parent=0 // pred_check_branch
    %13 = sbr.rel (0) target = $region9
  $region8: #{tpu_custom_call.1} parent=0 // pred_region
    _
  $region9: #{tpu_custom_call.1} parent=0 // pred_fallthru
    _
  // Predicated region
  $region10: #{tpu_custom_call.1} parent=0 // pred_check
    _
  $region11: #{tpu_custom_call.1} parent=0 // pred_check_branch
    %15 = sbr.rel (0) target = $region13
  $region12: #{tpu_custom_call.1} parent=0 // pred_region
    _
  $region13: #{tpu_custom_call.1} parent=0 // pred_fallthru
    _
  // Predicated region
  $region14: #{tpu_custom_call.1} parent=0 // pred_check
    _
  $region15: #{tpu_custom_call.1} parent=0 // pred_check_branch
    %17 = sbr.rel (0) target = $region17
  $region16: #{tpu_custom_call.1} parent=0 // pred_region
    _
  $region17: #{tpu_custom_call.1} parent=0 // pred_fallthru
    _
  // Predicated region
  $region18: #{tpu_custom_call.1} parent=0 // pred_check
    _
  $region19: #{tpu_custom_call.1} parent=0 // pred_check_branch
    %19 = sbr.rel (0) target = $region21
  $region20: #{tpu_custom_call.1} parent=0 // pred_region
    _
  $region21: #{tpu_custom_call.1} parent=0 // pred_fallthru
    _
  %v20 = vld [vmem:[%s0] sm:$0xff]
  %v21 = vld [vmem:[%s1] sm:$0xff]
  %v22 = vld [vmem:[%s1 + $0x8] sm:$0xff]
  %v23 = vld [vmem:[%s2] sm:$0x1]
  %v25 = vlaneseq
  %v26 = vshrl.u32 %v25, 7
  %v27 = vsub.s32 0, %v26
  %v28 = vrot.slane %v23, %v27
  %vm30 = vcmask 130048
  %v32 = vsel %vm30, %v20, 0
  %34 = vmatprep.subr.mxu0 0.0
  %35 = vmatpush1.msra.mxu0 %v21
  %36 = vmatprep.subr.mxu0 0.0
  %37 = vmatpush1.msra.mxu0 %v22
  %38 = vmatprep.subr.mxu0 0.0
  %39 = vmatpush1.msra.mxu0 0.0
  %40 = vmatprep.subr.mxu0 0.0
  %41 = vmatpush1.msra.mxu0 0.0
  %42 = vmatprep.subr.mxu0 0.0
  %43 = vmatpush1.msra.mxu0 0.0
  %44 = vmatprep.subr.mxu0 0.0
  %45 = vmatpush1.msra.mxu0 0.0
  %46 = vmatprep.subr.mxu0 0.0
  %47 = vmatpush1.msra.mxu0 0.0
  %48 = vmatprep.subr.mxu0 0.0
  %49 = vmatpush1.msra.mxu0 0.0
  %50 = vmatprep.subr.mxu0 0.0
  %51 = vmatpush1.msra.mxu0 0.0
  %52 = vmatprep.subr.mxu0 0.0
  %53 = vmatpush1.msra.mxu0 0.0
  %54 = vmatprep.subr.mxu0 0.0
  %55 = vmatpush1.msra.mxu0 0.0
  %56 = vmatprep.subr.mxu0 0.0
  %57 = vmatpush1.msra.mxu0 0.0
  %58 = vmatprep.subr.mxu0 0.0
  %59 = vmatpush1.msra.mxu0 0.0
  %60 = vmatprep.subr.mxu0 0.0
  %61 = vmatpush1.msra.mxu0 0.0
  %62 = vmatprep.subr.mxu0 0.0
  %63 = vmatpush1.msra.mxu0 0.0
  %64 = vmatprep.subr.mxu0 0.0
  %65 = vmatpush1.msra.mxu0 0.0
  %66 = vmatprep.subr.mxu0 0.0
  %67 = vmatpush1.msra.mxu0 0.0
  %68 = vmatprep.subr.mxu0 0.0
  %69 = vmatpush1.msra.mxu0 0.0
  %70 = vmatprep.subr.mxu0 0.0
  %71 = vmatpush1.msra.mxu0 0.0
  %72 = vmatprep.subr.mxu0 0.0
  %73 = vmatpush1.msra.mxu0 0.0
  %74 = vmatprep.subr.mxu0 0.0
  %75 = vmatpush1.msra.mxu0 0.0
  %76 = vmatprep.subr.mxu0 0.0
  %77 = vmatpush1.msra.mxu0 0.0
  %78 = vmatprep.subr.mxu0 0.0
  %79 = vmatpush1.msra.mxu0 0.0
  %80 = vmatprep.subr.mxu0 0.0
  %81 = vmatpush1.msra.mxu0 0.0
  %82 = vmatprep.subr.mxu0 0.0
  %83 = vmatpush1.msra.mxu0 0.0
  %84 = vmatprep.subr.mxu0 0.0
  %85 = vmatpush1.msra.mxu0 0.0
  %86 = vmatprep.subr.mxu0 0.0
  %87 = vmatpush1.msra.mxu0 0.0
  %88 = vmatprep.subr.mxu0 0.0
  %89 = vmatpush1.msra.mxu0 0.0
  %90 = vmatprep.subr.mxu0 0.0
  %91 = vmatpush1.msra.mxu0 0.0
  %92 = vmatprep.subr.mxu0 0.0
  %93 = vmatpush1.msra.mxu0 0.0
  %94 = vmatprep.subr.mxu0 0.0
  %95 = vmatpush1.msra.mxu0 0.0
  %96 = vmatprep.subr.mxu0 0.0
  %97 = vmatpush1.msra.mxu0 0.0
  %98 = vmatprep.mubr.f32.mxu0 0.0
  %99 = vmatmul.mubr.f32.gmra.mrb[0].mxu0 %v32
  %v100 = vpop.f32.mrb[0].mxu0
  %v101 = vadd.f32 %v28, %v100
  %v102 = vpop.f32.mrb[0].mxu0
  %103 = vdwg.mxu0
  %v104 = vmax.f32 %v101, 0.0
  %v105 = vld [vmem:[%s3] sm:$0xff]
  %v106 = vld [vmem:[%s3 + $0x8] sm:$0xff]
  %v107 = vld [vmem:[%s3 + $0x10] sm:$0xff]
  %v108 = vld [vmem:[%s3 + $0x18] sm:$0xff]
  %v109 = vld [vmem:[%s3 + $0x20] sm:$0xff]
  %v110 = vld [vmem:[%s3 + $0x28] sm:$0xff]
  %v111 = vld [vmem:[%s3 + $0x30] sm:$0xff]
  %v112 = vld [vmem:[%s3 + $0x38] sm:$0xff]
  %v113 = vld [vmem:[%s3 + $0x40] sm:$0xff]
  %v114 = vld [vmem:[%s3 + $0x48] sm:$0xff]
  %v115 = vld [vmem:[%s3 + $0x50] sm:$0xff]
  %v116 = vld [vmem:[%s3 + $0x58] sm:$0xff]
  %v117 = vld [vmem:[%s3 + $0x60] sm:$0xff]
  %v118 = vld [vmem:[%s3 + $0x68] sm:$0xff]
  %v119 = vld [vmem:[%s3 + $0x70] sm:$0xff]
  %v120 = vld [vmem:[%s3 + $0x78] sm:$0xff]
  %v121 = vld [vmem:[%s4] sm:$0x1]
  %v123 = vlaneseq
  %v124 = vshrl.u32 %v123, 7
  %v125 = vsub.s32 0, %v124
  %v126 = vrot.slane %v121, %v125
  %128 = vmatprep.subr.mxu0 0.0
  %129 = vmatpush1.msra.mxu0 %v105
  %130 = vmatprep.subr.mxu0 0.0
  %131 = vmatpush1.msra.mxu0 %v106
  %132 = vmatprep.subr.mxu0 0.0
  %133 = vmatpush1.msra.mxu0 %v107
  %134 = vmatprep.subr.mxu0 0.0
  %135 = vmatpush1.msra.mxu0 %v108
  %136 = vmatprep.subr.mxu0 0.0
  %137 = vmatpush1.msra.mxu0 %v109
  %138 = vmatprep.subr.mxu0 0.0
  %139 = vmatpush1.msra.mxu0 %v110
  %140 = vmatprep.subr.mxu0 0.0
  %141 = vmatpush1.msra.mxu0 %v111
  %142 = vmatprep.subr.mxu0 0.0
  %143 = vmatpush1.msra.mxu0 %v112
  %144 = vmatprep.subr.mxu0 0.0
  %145 = vmatpush1.msra.mxu0 %v113
  %146 = vmatprep.subr.mxu0 0.0
  %147 = vmatpush1.msra.mxu0 %v114
  %148 = vmatprep.subr.mxu0 0.0
  %149 = vmatpush1.msra.mxu0 %v115
  %150 = vmatprep.subr.mxu0 0.0
  %151 = vmatpush1.msra.mxu0 %v116
  %152 = vmatprep.subr.mxu0 0.0
  %153 = vmatpush1.msra.mxu0 %v117
  %154 = vmatprep.subr.mxu0 0.0
  %155 = vmatpush1.msra.mxu0 %v118
  %156 = vmatprep.subr.mxu0 0.0
  %157 = vmatpush1.msra.mxu0 %v119
  %158 = vmatprep.subr.mxu0 0.0
  %159 = vmatpush1.msra.mxu0 %v120
  %160 = vmatprep.subr.mxu0 0.0
  %161 = vmatpush1.msra.mxu0 0.0
  %162 = vmatprep.subr.mxu0 0.0
  %163 = vmatpush1.msra.mxu0 0.0
  %164 = vmatprep.subr.mxu0 0.0
  %165 = vmatpush1.msra.mxu0 0.0
  %166 = vmatprep.subr.mxu0 0.0
  %167 = vmatpush1.msra.mxu0 0.0
  %168 = vmatprep.subr.mxu0 0.0
  %169 = vmatpush1.msra.mxu0 0.0
  %170 = vmatprep.subr.mxu0 0.0
  %171 = vmatpush1.msra.mxu0 0.0
  %172 = vmatprep.subr.mxu0 0.0
  %173 = vmatpush1.msra.mxu0 0.0
  %174 = vmatprep.subr.mxu0 0.0
  %175 = vmatpush1.msra.mxu0 0.0
  %176 = vmatprep.subr.mxu0 0.0
  %177 = vmatpush1.msra.mxu0 0.0
  %178 = vmatprep.subr.mxu0 0.0
  %179 = vmatpush1.msra.mxu0 0.0
  %180 = vmatprep.subr.mxu0 0.0
  %181 = vmatpush1.msra.mxu0 0.0
  %182 = vmatprep.subr.mxu0 0.0
  %183 = vmatpush1.msra.mxu0 0.0
  %184 = vmatprep.subr.mxu0 0.0
  %185 = vmatpush1.msra.mxu0 0.0
  %186 = vmatprep.subr.mxu0 0.0
  %187 = vmatpush1.msra.mxu0 0.0
  %188 = vmatprep.subr.mxu0 0.0
  %189 = vmatpush1.msra.mxu0 0.0
  %190 = vmatprep.subr.mxu0 0.0
  %191 = vmatpush1.msra.mxu0 0.0
  %192 = vmatprep.mubr.f32.mxu0 0.0
  %193 = vmatmul.mubr.f32.gmra.mrb[0].mxu0 %v104
  %v194 = vpop.f32.mrb[0].mxu0
  %v195 = vadd.f32 %v126, %v194
  %v196 = vpop.f32.mrb[0].mxu0
  %197 = vdwg.mxu0
  %199 = vrot.lane.b32.xlu0 %v195, 127
  %v200 = vpop.permute.xlu0 %199
  %vm202 = vcmask 31744
  %v203 = vsel %vm202, %v200, 0.0
  %204 = vadd.xlane.f32.xlu0 %v203
  %v205 = vpop.xlane.xlu0 %204
  %v206 = vrot.slane %v205, 4
  %v207 = vadd.f32 %v205, %v206
  %v208 = vrot.slane %v207, 2
  %v209 = vadd.f32 %v207, %v208
  %v210 = vrot.slane %v209, 1
  %v211 = vadd.f32 %v209, %v210
  %s212 = vtos %v211
  %v213 = vrcp.pop 32.0
  %s214 = vtos %v213
  %s215 = smul.f32 %s212, %s214
  %v216 = vstv %s215
  %v217 = vsub.f32 %v195, %v216
  %218 = vset.pattern.permute.xlu0 0
  %219 = vperm.xlu0 %218, %v195
  %v220 = vpop.permute.xlu0 %219
  %v222 = vadd.f32 %v220, %v217
  %224 = vrot.lane.b32.xlu0 %v222, 127
  %v225 = vpop.permute.xlu0 %224
  %227 = vst.msk [vmem:[%s5] sm:$0xff] %vm202, %v225
  // Predicated region
  $region22: #{tpu_custom_call.1} parent=0 // pred_check
    _
  $region23: #{tpu_custom_call.1} parent=0 // pred_check_branch
    %229 = sbr.rel (0) target = $region25
  $region24: #{tpu_custom_call.1} parent=0 // pred_region
    _
  $region25: #{tpu_custom_call.1} parent=0 // pred_fallthru
    _
  // Predicated region
  $region26: #{tpu_custom_call.1} parent=0 // pred_check
    _
  $region27: #{tpu_custom_call.1} parent=0 // pred_check_branch
    %231 = sbr.rel (0) target = $region29
  $region28: #{tpu_custom_call.1} parent=0 // pred_region
    _
  $region29: #{tpu_custom_call.1} parent=0 // pred_fallthru
    _

</llo_original>
